<compile_context>
chip_gen: v7x
topology: tpu7x:2x2x1
jax: 0.10.0
libtpu: 0.0.40
codegen_flags: <defaults>
</compile_context>

<pallas_src>
import functools

import jax
import jax.numpy as jnp
from jax.experimental import pallas as pl
from jax.experimental.pallas import tpu as pltpu


def conv1d_block_kernel(xp_ref, w_ref, p_ref, m_ref, mt_ref, s_ref, st_ref,
                        o_ref, xcol_ref, *, kernel_size, stride, t_out, bt,
                        cpg, eps, gate_im2col):
    # xp_ref:   (bt, stride, C_in, T_phase) bf16  polyphase input planes
    # w_ref:    (Ct, K*C_in + 1) bf16             conv weight + bias column
    # p_ref:    (Ct, 2) f32                       [gamma, beta]
    # m_ref:    (G, Ct) f32                       channel -> group one-hot rows
    # mt_ref:   (Ct, G) f32                       transpose block of m
    # s_ref:    (bt*t_out, bt) f32                lane -> batch segment one-hot
    # st_ref:   (bt, bt*t_out) f32                its transpose
    # o_ref:    (1, Ct, bt*t_out)                 lane-dense output tile
    # xcol_ref: (K*C_in + 1, bt*t_out) bf16       im2col slab (+ ones row)
    K = kernel_size
    pad = K - 1
    c_in = xp_ref.shape[2]
    ct = o_ref.shape[1]
    lanes = bt * t_out

    def build_slab():
        # Ones row: conv bias is folded into the single MXU matmul.
        xcol_ref[pl.ds(K * c_in, 1), :] = jnp.ones((1, lanes), xcol_ref.dtype)
        for bb in range(bt):                       # static -> unrolled
            base = bb * t_out
            for k in range(K):
                # tap k at output j reads input i = j*stride + k - pad,
                # i.e. phase plane p at position j + q (q <= 0).
                q, p = divmod(k - pad, stride)
                j_lo = -q                          # first output with real data
                head = min(j_lo, t_out)
                if head > 0:                       # causal zero padding (head only)
                    xcol_ref[pl.ds(k * c_in, c_in), pl.ds(base, head)] = (
                        jnp.zeros((c_in, head), xcol_ref.dtype))
                n = t_out - j_lo
                if n <= 0:
                    continue
                xcol_ref[pl.ds(k * c_in, c_in), pl.ds(base + j_lo, n)] = (
                    xp_ref[bb, p, :, pl.ds(0, n)])

    if gate_im2col:
        # Channel-tile axis is innermost and "arbitrary", and the x block is
        # constant in it, so the slab built at cc == 0 is reused by every tile.
        @pl.when(pl.program_id(1) == 0)
        def _():
            build_slab()
    else:
        build_slab()

    # ---- fused causal Conv1d + bias: one bf16 MXU matmul, f32 accumulation ----
    acc = jnp.dot(w_ref[...], xcol_ref[...],
                  preferred_element_type=jnp.float32)              # (Ct, lanes)

    # ---- GroupNorm per packed batch element (segment matmuls over lanes) ----
    s = s_ref[...]                                                 # (lanes, bt)
    inv_n = 1.0 / float(cpg * t_out)
    sum_cb = jnp.dot(acc, s, preferred_element_type=jnp.float32)        # (Ct, bt)
    sq_cb = jnp.dot(acc * acc, s, preferred_element_type=jnp.float32)   # (Ct, bt)
    stats_gb = jnp.dot(m_ref[...], jnp.concatenate([sum_cb, sq_cb], axis=1),
                       preferred_element_type=jnp.float32) * inv_n      # (G, 2bt)
    mean_gb = stats_gb[:, :bt]
    var_gb = jnp.maximum(stats_gb[:, bt:] - mean_gb * mean_gb, 0.0)
    inv_gb = jax.lax.rsqrt(var_gb + eps)
    mi_cb = jnp.dot(mt_ref[...], jnp.concatenate([mean_gb, inv_gb], axis=1),
                    preferred_element_type=jnp.float32)                 # (Ct, 2bt)
    a_cb = mi_cb[:, bt:] * p_ref[:, 0:1]                # inv_std * gamma
    b_cb = p_ref[:, 1:2] - mi_cb[:, :bt] * a_cb         # beta - mean * scale
    ab_cl = jnp.dot(jnp.concatenate([a_cb, b_cb], axis=0), st_ref[...],
                    preferred_element_type=jnp.float32)                 # (2Ct, lanes)
    y = acc * ab_cl[:ct, :] + ab_cl[ct:, :]             # single FMA pass

    # ---- Mish: y*tanh(softplus(y)) == y*(1 - 2/(e^y (e^y + 2) + 2)) ----
    # Clamp at 40: correction underflows there (Mish(y) == y in f32) and the
    # squared exponential stays finite.
    ew = jnp.exp(jnp.minimum(y, 40.0))
    out = y * (1.0 - 2.0 * pl.reciprocal(ew * (ew + 2.0) + 2.0, approx=True))
    o_ref[0] = out.astype(o_ref.dtype)


def _pick_c_tile(c_out, cpg, target=256):
    """Group-aligned C_out tile; multiple of 128 when actually tiling."""
    # TODO(synk): drop target to 128 on v5e (4x128x128 MXU, 16 MiB scoped VMEM).
    if c_out <= target:
        return c_out
    for t in range(target, 127, -1):
        if c_out % t == 0 and t % cpg == 0 and t % 128 == 0:
            return t
    return c_out          # fall back to a single channel tile


def conv1d_block(x, w, b, gamma, beta, *, kernel_size, stride, n_groups,
                 eps=1e-5):
    """Causal Conv1d -> GroupNorm -> Mish.  x: (B, C_in, T), w: (C_out, C_in, K)."""
    B, C_in, T = x.shape
    C_out = w.shape[0]
    K = kernel_size
    assert C_out % n_groups == 0
    cpg = C_out // n_groups
    G = n_groups

    pad = K - 1                                   # dilation=1, causal padding
    L_out = (T + 2 * pad - K) // stride + 1       # torch Conv1d output length
    last_n = (2 * pad - K) // stride + 1          # causal trim
    L_keep = L_out - last_n if last_n > 0 else L_out

    # Lane packing: with short horizons the time axis underfills the 128 lanes
    # and the MXU N dimension, so pack several batch elements per grid step.
    if B > 1 and L_keep < 128:
        bt = max(1, min(B, 128 // max(L_keep, 1)))
        while B % bt:
            bt -= 1
    else:
        bt = 1
    nb = B // bt
    lanes = bt * L_keep

    c_tile = _pick_c_tile(C_out, cpg)
    # GroupNorm tiling is only exact if a channel tile never splits a group.
    assert c_tile % cpg == 0 and C_out % c_tile == 0, (c_tile, cpg, C_out)
    n_ct = C_out // c_tile

    # bf16 input + polyphase planes so every tap is a contiguous lane slice.
    T_phase = max(-(-T // stride), L_keep)
    xb = x.astype(jnp.bfloat16)
    if stride == 1:
        xp = xb.reshape(B, 1, C_in, T)
        if T_phase > T:
            xp = jnp.pad(xp, ((0, 0), (0, 0), (0, 0), (0, T_phase - T)))
    else:
        planes = []
        for p in range(stride):
            seg = xb[:, :, p::stride]
            if seg.shape[-1] < T_phase:
                seg = jnp.pad(seg, ((0, 0), (0, 0), (0, T_phase - seg.shape[-1])))
            planes.append(seg)
        xp = jnp.stack(planes, axis=1)            # (B, stride, C_in, T_phase)

    # Conv weight -> tap-major (C_out, K*C_in) + bias column (ones row in slab).
    w2 = jnp.transpose(w, (0, 2, 1)).reshape(C_out, K * C_in)
    w2b = jnp.concatenate([w2, b[:, None]], axis=1).astype(jnp.bfloat16)
    params = jnp.stack([gamma, beta], axis=1).astype(jnp.float32)   # (C_out, 2)

    # Group / batch-segment assignment matrices (VMEM-resident, constant maps).
    grp = jnp.arange(C_out, dtype=jnp.int32) // cpg
    m = (grp[None, :] == jnp.arange(G, dtype=jnp.int32)[:, None]).astype(jnp.float32)
    mt = m.T
    seg_id = jnp.arange(lanes, dtype=jnp.int32) // L_keep
    smat = (seg_id[:, None] == jnp.arange(bt, dtype=jnp.int32)[None, :]
            ).astype(jnp.float32)                                   # (lanes, bt)
    smat_t = smat.T

    gate_im2col = (n_ct > 1) and (nb > 1)
    dim_sem = ("parallel", "arbitrary") if gate_im2col else ("parallel", "parallel")

    # Explicit VMEM budget: double-buffered blocks + scratch + live f32 temps.
    f32 = 4
    est = (2 * bt * stride * C_in * T_phase * 2          # x blocks (bf16)
           + 2 * c_tile * (K * C_in + 1) * 2             # weight blocks
           + 2 * c_tile * 2 * f32                        # gamma/beta
           + 4 * G * c_tile * f32                        # m, mt
           + 4 * lanes * bt * f32                        # S, S^T
           + 2 * c_tile * lanes * x.dtype.itemsize       # out blocks
           + (K * C_in + 1) * lanes * 2                  # im2col scratch
           + 6 * c_tile * lanes * f32)                   # live temporaries
    vmem_limit = int(min(max(est * 3 // 2 + (1 << 20), 16 << 20), 64 << 20))

    kernel = functools.partial(
        conv1d_block_kernel, kernel_size=K, stride=stride, t_out=L_keep, bt=bt,
        cpg=cpg, eps=eps, gate_im2col=gate_im2col)

    # TODO(synk): for very long horizons, tile T with a (K-1) halo + two-sweep
    # GroupNorm (and on v7x consider MRB per-tap accumulation instead of the
    # im2col slab); whole-T residency is fine at these shapes.
    out_raw = pl.pallas_call(
        kernel,
        out_shape=jax.ShapeDtypeStruct((nb, C_out, lanes), x.dtype),
        grid=(nb, n_ct),
        in_specs=[
            pl.BlockSpec((bt, stride, C_in, T_phase), lambda bb, cc: (bb, 0, 0, 0)),
            pl.BlockSpec((c_tile, K * C_in + 1), lambda bb, cc: (cc, 0)),
            pl.BlockSpec((c_tile, 2), lambda bb, cc: (cc, 0)),
            pl.BlockSpec((G, c_tile), lambda bb, cc: (0, cc)),
            pl.BlockSpec((c_tile, G), lambda bb, cc: (cc, 0)),
            pl.BlockSpec((lanes, bt), lambda bb, cc: (0, 0)),
            pl.BlockSpec((bt, lanes), lambda bb, cc: (0, 0)),
        ],
        out_specs=pl.BlockSpec((1, c_tile, lanes), lambda bb, cc: (bb, cc, 0)),
        scratch_shapes=[pltpu.VMEM((K * C_in + 1, lanes), jnp.bfloat16)],
        compiler_params=pltpu.CompilerParams(
            dimension_semantics=dim_sem, vmem_limit_bytes=vmem_limit),
    )(xp, w2b, params, m, mt, smat, smat_t)

    # Unpack the lane-packed batch: (nb, C_out, bt*L) -> (B, C_out, L).
    out = out_raw.reshape(nb, C_out, bt, L_keep)
    return jnp.transpose(out, (0, 2, 1, 3)).reshape(B, C_out, L_keep)


def reference(x, w, b, gamma, beta, kernel_size, stride, n_groups, eps=1e-5):
    """Pure-JAX mirror of the PyTorch module for verification."""
    pad = kernel_size - 1
    y = jax.lax.conv_general_dilated(
        x, w, window_strides=(stride,), padding=[(pad, pad)],
        dimension_numbers=('NCH', 'OIH', 'NCH'))
    y = y + b[None, :, None]
    last_n = (2 * pad - kernel_size) // stride + 1
    if last_n > 0:
        y = y[:, :, :-last_n]
    B, C, L = y.shape
    yg = y.reshape(B, n_groups, -1)
    mean = yg.mean(-1, keepdims=True)
    var = ((yg - mean) ** 2).mean(-1, keepdims=True)
    yn = ((yg - mean) / jnp.sqrt(var + eps)).reshape(B, C, L)
    yn = yn * gamma[None, :, None] + beta[None, :, None]
    return yn * jnp.tanh(jnp.log1p(jnp.exp(yn)))


if __name__ == "__main__":
    configs = [
        dict(B=2, C_in=4, C_out=8, T=16, K=3, stride=1, n_groups=4),
        dict(B=2, C_in=8, C_out=16, T=32, K=5, stride=1, n_groups=4),
        dict(B=2, C_in=8, C_out=16, T=32, K=5, stride=2, n_groups=4),
        dict(B=2, C_in=8, C_out=16, T=256, K=3, stride=1, n_groups=4),
    ]
    key = jax.random.PRNGKey(0)
    for cfg in configs:
        B, C_in, C_out, T = cfg["B"], cfg["C_in"], cfg["C_out"], cfg["T"]
        K, stride, n_groups = cfg["K"], cfg["stride"], cfg["n_groups"]
        key, k1, k2, k3 = jax.random.split(key, 4)
        x = jax.random.normal(k1, (B, C_in, T), jnp.float32)
        bound = 1.0 / (C_in * K) ** 0.5          # torch Conv1d default init
        w = jax.random.uniform(k2, (C_out, C_in, K), jnp.float32, -bound, bound)
        b = jax.random.uniform(k3, (C_out,), jnp.float32, -bound, bound)
        gamma = jnp.ones((C_out,), jnp.float32)  # GroupNorm default affine
        beta = jnp.zeros((C_out,), jnp.float32)

        out = conv1d_block(x, w, b, gamma, beta, kernel_size=K, stride=stride,
                           n_groups=n_groups)
        out = jax.block_until_ready(out)

        # Reference on bf16-quantized conv operands (kernel uses the bf16 MXU
        # path with f32 accumulation); remaining deltas are bf16 bias, the
        # E[x^2]-mean^2 variance and the approx reciprocal in Mish.
        xq = x.astype(jnp.bfloat16).astype(jnp.float32)
        wq = w.astype(jnp.bfloat16).astype(jnp.float32)
        ref = reference(xq, wq, b, gamma, beta, K, stride, n_groups)

        assert out.shape == ref.shape, (out.shape, ref.shape)
        err = float(jnp.max(jnp.abs(out - ref)))
        assert err < 2e-2, (cfg, err)
    print("KERNEL_OK")
</pallas_src>

<mosaic_0001>
module attributes {stable_mosaic.version = 11 : i64} {
  func.func @conv1d_block_kernel(%arg0: i32, %arg1: i32, %arg2: memref<2x1x4x16xbf16, #tpu.memory_space<vmem>>, %arg3: memref<8x13xbf16, #tpu.memory_space<vmem>>, %arg4: memref<8x2xf32, #tpu.memory_space<vmem>>, %arg5: memref<4x8xf32, #tpu.memory_space<vmem>>, %arg6: memref<8x4xf32, #tpu.memory_space<vmem>>, %arg7: memref<32x2xf32, #tpu.memory_space<vmem>>, %arg8: memref<2x32xf32, #tpu.memory_space<vmem>>, %arg9: memref<1x8x32xf32, #tpu.memory_space<vmem>>, %arg10: memref<13x32xbf16, #tpu.memory_space<vmem>>) attributes {dimension_semantics = [#tpu.dimension_semantics<parallel>, #tpu.dimension_semantics<parallel>], iteration_bounds = array<i64: 1, 1>, scalar_prefetch = 0 : i64, scratch_operands = 1 : i64, tpu.core_type = #tpu.core_type<tc>, window_params = [{transform_indices = @transform_0, window_bounds = array<i64: 2, 1, 4, 16>}, {transform_indices = @transform_1, window_bounds = array<i64: 8, 13>}, {transform_indices = @transform_2, window_bounds = array<i64: 8, 2>}, {transform_indices = @transform_3, window_bounds = array<i64: 4, 8>}, {transform_indices = @transform_4, window_bounds = array<i64: 8, 4>}, {pipeline_mode = #tpu.pipeline_mode<synchronous>, transform_indices = @transform_5, window_bounds = array<i64: 32, 2>}, {pipeline_mode = #tpu.pipeline_mode<synchronous>, transform_indices = @transform_6, window_bounds = array<i64: 2, 32>}, {transform_indices = @transform_7, window_bounds = array<i64: 1, 8, 32>}]} {
    %cst = arith.constant 1.000000e+00 : bf16
    %0 = vector.broadcast %cst : bf16 to vector<1x32xbf16>
    %c12 = arith.constant 12 : index
    %c0 = arith.constant 0 : index
    %1 = vector.load %arg10[%c12, %c0] : memref<13x32xbf16, #tpu.memory_space<vmem>>, vector<1x32xbf16>
    tpu.vector_store %arg10[%c12, %c0], %0 {strides = array<i32>} : memref<13x32xbf16, #tpu.memory_space<vmem>>, vector<1x32xbf16>,
    %cst_0 = arith.constant 0.000000e+00 : bf16
    %2 = vector.broadcast %cst_0 : bf16 to vector<4x2xbf16>
    %c0_1 = arith.constant 0 : index
    %c0_2 = arith.constant 0 : index
    %3 = vector.load %arg10[%c0_1, %c0_2] : memref<13x32xbf16, #tpu.memory_space<vmem>>, vector<4x2xbf16>
    tpu.vector_store %arg10[%c0_1, %c0_2], %2 {strides = array<i32>} : memref<13x32xbf16, #tpu.memory_space<vmem>>, vector<4x2xbf16>,
    %c0_3 = arith.constant 0 : index
    %c0_4 = arith.constant 0 : index
    %c0_5 = arith.constant 0 : index
    %c0_6 = arith.constant 0 : index
    %4 = vector.load %arg2[%c0_3, %c0_4, %c0_5, %c0_6] : memref<2x1x4x16xbf16, #tpu.memory_space<vmem>>, vector<1x1x4x14xbf16>
    %5 = vector.shape_cast %4 : vector<1x1x4x14xbf16> to vector<4x14xbf16>
    %c0_7 = arith.constant 0 : index
    %c2 = arith.constant 2 : index
    %6 = vector.load %arg10[%c0_7, %c2] : memref<13x32xbf16, #tpu.memory_space<vmem>>, vector<4x14xbf16>
    tpu.vector_store %arg10[%c0_7, %c2], %5 {strides = array<i32>} : memref<13x32xbf16, #tpu.memory_space<vmem>>, vector<4x14xbf16>,
    %cst_8 = arith.constant 0.000000e+00 : bf16
    %7 = vector.broadcast %cst_8 : bf16 to vector<4x1xbf16>
    %c4 = arith.constant 4 : index
    %c0_9 = arith.constant 0 : index
    %8 = vector.load %arg10[%c4, %c0_9] : memref<13x32xbf16, #tpu.memory_space<vmem>>, vector<4x1xbf16>
    tpu.vector_store %arg10[%c4, %c0_9], %7 {strides = array<i32>} : memref<13x32xbf16, #tpu.memory_space<vmem>>, vector<4x1xbf16>,
    %c0_10 = arith.constant 0 : index
    %c0_11 = arith.constant 0 : index
    %c0_12 = arith.constant 0 : index
    %c0_13 = arith.constant 0 : index
    %9 = vector.load %arg2[%c0_10, %c0_11, %c0_12, %c0_13] : memref<2x1x4x16xbf16, #tpu.memory_space<vmem>>, vector<1x1x4x15xbf16>
    %10 = vector.shape_cast %9 : vector<1x1x4x15xbf16> to vector<4x15xbf16>
    %c4_14 = arith.constant 4 : index
    %c1 = arith.constant 1 : index
    %11 = vector.load %arg10[%c4_14, %c1] : memref<13x32xbf16, #tpu.memory_space<vmem>>, vector<4x15xbf16>
    tpu.vector_store %arg10[%c4_14, %c1], %10 {strides = array<i32>} : memref<13x32xbf16, #tpu.memory_space<vmem>>, vector<4x15xbf16>,
    %c0_15 = arith.constant 0 : index
    %c0_16 = arith.constant 0 : index
    %c0_17 = arith.constant 0 : index
    %c0_18 = arith.constant 0 : index
    %12 = vector.load %arg2[%c0_15, %c0_16, %c0_17, %c0_18] : memref<2x1x4x16xbf16, #tpu.memory_space<vmem>>, vector<1x1x4x16xbf16>
    %13 = vector.shape_cast %12 : vector<1x1x4x16xbf16> to vector<4x16xbf16>
    %c8 = arith.constant 8 : index
    %c0_19 = arith.constant 0 : index
    %14 = vector.load %arg10[%c8, %c0_19] : memref<13x32xbf16, #tpu.memory_space<vmem>>, vector<4x16xbf16>
    tpu.vector_store %arg10[%c8, %c0_19], %13 {strides = array<i32>} : memref<13x32xbf16, #tpu.memory_space<vmem>>, vector<4x16xbf16>,
    %cst_20 = arith.constant 0.000000e+00 : bf16
    %15 = vector.broadcast %cst_20 : bf16 to vector<4x2xbf16>
    %c0_21 = arith.constant 0 : index
    %c16 = arith.constant 16 : index
    %16 = vector.load %arg10[%c0_21, %c16] : memref<13x32xbf16, #tpu.memory_space<vmem>>, vector<4x2xbf16>
    tpu.vector_store %arg10[%c0_21, %c16], %15 {strides = array<i32>} : memref<13x32xbf16, #tpu.memory_space<vmem>>, vector<4x2xbf16>,
    %c1_22 = arith.constant 1 : index
    %c0_23 = arith.constant 0 : index
    %c0_24 = arith.constant 0 : index
    %c0_25 = arith.constant 0 : index
    %17 = vector.load %arg2[%c1_22, %c0_23, %c0_24, %c0_25] : memref<2x1x4x16xbf16, #tpu.memory_space<vmem>>, vector<1x1x4x14xbf16>
    %18 = vector.shape_cast %17 : vector<1x1x4x14xbf16> to vector<4x14xbf16>
    %c0_26 = arith.constant 0 : index
    %c18 = arith.constant 18 : index
    %19 = vector.load %arg10[%c0_26, %c18] : memref<13x32xbf16, #tpu.memory_space<vmem>>, vector<4x14xbf16>
    tpu.vector_store %arg10[%c0_26, %c18], %18 {strides = array<i32>} : memref<13x32xbf16, #tpu.memory_space<vmem>>, vector<4x14xbf16>,
    %cst_27 = arith.constant 0.000000e+00 : bf16
    %20 = vector.broadcast %cst_27 : bf16 to vector<4x1xbf16>
    %c4_28 = arith.constant 4 : index
    %c16_29 = arith.constant 16 : index
    %21 = vector.load %arg10[%c4_28, %c16_29] : memref<13x32xbf16, #tpu.memory_space<vmem>>, vector<4x1xbf16>
    tpu.vector_store %arg10[%c4_28, %c16_29], %20 {strides = array<i32>} : memref<13x32xbf16, #tpu.memory_space<vmem>>, vector<4x1xbf16>,
    %c1_30 = arith.constant 1 : index
    %c0_31 = arith.constant 0 : index
    %c0_32 = arith.constant 0 : index
    %c0_33 = arith.constant 0 : index
    %22 = vector.load %arg2[%c1_30, %c0_31, %c0_32, %c0_33] : memref<2x1x4x16xbf16, #tpu.memory_space<vmem>>, vector<1x1x4x15xbf16>
    %23 = vector.shape_cast %22 : vector<1x1x4x15xbf16> to vector<4x15xbf16>
    %c4_34 = arith.constant 4 : index
    %c17 = arith.constant 17 : index
    %24 = vector.load %arg10[%c4_34, %c17] : memref<13x32xbf16, #tpu.memory_space<vmem>>, vector<4x15xbf16>
    tpu.vector_store %arg10[%c4_34, %c17], %23 {strides = array<i32>} : memref<13x32xbf16, #tpu.memory_space<vmem>>, vector<4x15xbf16>,
    %c1_35 = arith.constant 1 : index
    %c0_36 = arith.constant 0 : index
    %c0_37 = arith.constant 0 : index
    %c0_38 = arith.constant 0 : index
    %25 = vector.load %arg2[%c1_35, %c0_36, %c0_37, %c0_38] : memref<2x1x4x16xbf16, #tpu.memory_space<vmem>>, vector<1x1x4x16xbf16>
    %26 = vector.shape_cast %25 : vector<1x1x4x16xbf16> to vector<4x16xbf16>
    %c8_39 = arith.constant 8 : index
    %c16_40 = arith.constant 16 : index
    %27 = vector.load %arg10[%c8_39, %c16_40] : memref<13x32xbf16, #tpu.memory_space<vmem>>, vector<4x16xbf16>
    tpu.vector_store %arg10[%c8_39, %c16_40], %26 {strides = array<i32>} : memref<13x32xbf16, #tpu.memory_space<vmem>>, vector<4x16xbf16>,
    %c0_41 = arith.constant 0 : index
    %c0_42 = arith.constant 0 : index
    %28 = vector.load %arg3[%c0_41, %c0_42] : memref<8x13xbf16, #tpu.memory_space<vmem>>, vector<8x13xbf16>
    %c0_43 = arith.constant 0 : index
    %c0_44 = arith.constant 0 : index
    %29 = vector.load %arg10[%c0_43, %c0_44] : memref<13x32xbf16, #tpu.memory_space<vmem>>, vector<13x32xbf16>
    %cst_45 = arith.constant dense<0.000000e+00> : vector<8x32xf32>
    %30 = tpu.matmul %28, %29, %cst_45 {dimension_numbers = #tpu.dot_dimension_numbers<[1], [0], [0], [1], [0, 0, 1, 1], [], []>} : vector<8x13xbf16>, vector<13x32xbf16>, vector<8x32xf32> -> vector<8x32xf32>
    %c0_46 = arith.constant 0 : index
    %c0_47 = arith.constant 0 : index
    %31 = vector.load %arg7[%c0_46, %c0_47] : memref<32x2xf32, #tpu.memory_space<vmem>>, vector<32x2xf32>
    %cst_48 = arith.constant dense<0.000000e+00> : vector<8x2xf32>
    %32 = tpu.matmul %30, %31, %cst_48 {dimension_numbers = #tpu.dot_dimension_numbers<[1], [0], [0], [1], [0, 0, 1, 1], [], []>} : vector<8x32xf32>, vector<32x2xf32>, vector<8x2xf32> -> vector<8x2xf32>
    %33 = arith.mulf %30, %30 : vector<8x32xf32>
    %cst_49 = arith.constant dense<0.000000e+00> : vector<8x2xf32>
    %34 = tpu.matmul %33, %31, %cst_49 {dimension_numbers = #tpu.dot_dimension_numbers<[1], [0], [0], [1], [0, 0, 1, 1], [], []>} : vector<8x32xf32>, vector<32x2xf32>, vector<8x2xf32> -> vector<8x2xf32>
    %c0_50 = arith.constant 0 : index
    %c0_51 = arith.constant 0 : index
    %35 = vector.load %arg5[%c0_50, %c0_51] : memref<4x8xf32, #tpu.memory_space<vmem>>, vector<4x8xf32>
    %36 = tpu.concatenate %32, %34 in 1 : vector<8x2xf32>, vector<8x2xf32> -> vector<8x4xf32>
    %cst_52 = arith.constant dense<0.000000e+00> : vector<4x4xf32>
    %37 = tpu.matmul %35, %36, %cst_52 {dimension_numbers = #tpu.dot_dimension_numbers<[1], [0], [0], [1], [0, 0, 1, 1], [], []>} : vector<4x8xf32>, vector<8x4xf32>, vector<4x4xf32> -> vector<4x4xf32>
    %cst_53 = arith.constant 3.125000e-02 : f32
    %38 = vector.broadcast %cst_53 : f32 to vector<4x4xf32>
    %39 = arith.mulf %37, %38 : vector<4x4xf32>
    %40 = vector.extract_strided_slice %39 {offsets = [0, 0], sizes = [4, 2], strides = [1, 1]} : vector<4x4xf32> to vector<4x2xf32>
    %41 = vector.extract_strided_slice %39 {offsets = [0, 2], sizes = [4, 2], strides = [1, 1]} : vector<4x4xf32> to vector<4x2xf32>
    %42 = arith.mulf %40, %40 : vector<4x2xf32>
    %43 = arith.subf %41, %42 : vector<4x2xf32>
    %cst_54 = arith.constant 0.000000e+00 : f32
    %44 = vector.broadcast %cst_54 : f32 to vector<4x2xf32>
    %45 = arith.maximumf %43, %44 : vector<4x2xf32>
    %cst_55 = arith.constant 9.99999974E-6 : f32
    %46 = vector.broadcast %cst_55 : f32 to vector<4x2xf32>
    %47 = arith.addf %45, %46 : vector<4x2xf32>
    %48 = math.rsqrt %47 : vector<4x2xf32>
    %c0_56 = arith.constant 0 : index
    %c0_57 = arith.constant 0 : index
    %49 = vector.load %arg6[%c0_56, %c0_57] : memref<8x4xf32, #tpu.memory_space<vmem>>, vector<8x4xf32>
    %50 = tpu.concatenate %40, %48 in 1 : vector<4x2xf32>, vector<4x2xf32> -> vector<4x4xf32>
    %cst_58 = arith.constant dense<0.000000e+00> : vector<8x4xf32>
    %51 = tpu.matmul %49, %50, %cst_58 {dimension_numbers = #tpu.dot_dimension_numbers<[1], [0], [0], [1], [0, 0, 1, 1], [], []>} : vector<8x4xf32>, vector<4x4xf32>, vector<8x4xf32> -> vector<8x4xf32>
    %52 = vector.extract_strided_slice %51 {offsets = [0, 2], sizes = [8, 2], strides = [1, 1]} : vector<8x4xf32> to vector<8x2xf32>
    %c0_59 = arith.constant 0 : index
    %c0_60 = arith.constant 0 : index
    %53 = vector.load %arg4[%c0_59, %c0_60] : memref<8x2xf32, #tpu.memory_space<vmem>>, vector<8x1xf32>
    %54 = vector.broadcast %53 : vector<8x1xf32> to vector<8x2xf32>
    %55 = arith.mulf %52, %54 : vector<8x2xf32>
    %c0_61 = arith.constant 0 : index
    %c1_62 = arith.constant 1 : index
    %56 = vector.load %arg4[%c0_61, %c1_62] : memref<8x2xf32, #tpu.memory_space<vmem>>, vector<8x1xf32>
    %57 = vector.extract_strided_slice %51 {offsets = [0, 0], sizes = [8, 2], strides = [1, 1]} : vector<8x4xf32> to vector<8x2xf32>
    %58 = arith.mulf %57, %55 : vector<8x2xf32>
    %59 = vector.broadcast %56 : vector<8x1xf32> to vector<8x2xf32>
    %60 = arith.subf %59, %58 : vector<8x2xf32>
    %61 = tpu.concatenate %55, %60 in 0 : vector<8x2xf32>, vector<8x2xf32> -> vector<16x2xf32>
    %c0_63 = arith.constant 0 : index
    %c0_64 = arith.constant 0 : index
    %62 = vector.load %arg8[%c0_63, %c0_64] : memref<2x32xf32, #tpu.memory_space<vmem>>, vector<2x32xf32>
    %cst_65 = arith.constant dense<0.000000e+00> : vector<16x32xf32>
    %63 = tpu.matmul %61, %62, %cst_65 {dimension_numbers = #tpu.dot_dimension_numbers<[1], [0], [0], [1], [0, 0, 1, 1], [], []>} : vector<16x2xf32>, vector<2x32xf32>, vector<16x32xf32> -> vector<16x32xf32>
    %64 = vector.extract_strided_slice %63 {offsets = [0, 0], sizes = [8, 32], strides = [1, 1]} : vector<16x32xf32> to vector<8x32xf32>
    %65 = arith.mulf %30, %64 : vector<8x32xf32>
    %66 = vector.extract_strided_slice %63 {offsets = [8, 0], sizes = [8, 32], strides = [1, 1]} : vector<16x32xf32> to vector<8x32xf32>
    %67 = arith.addf %65, %66 : vector<8x32xf32>
    %cst_66 = arith.constant 4.000000e+01 : f32
    %68 = vector.broadcast %cst_66 : f32 to vector<8x32xf32>
    %69 = arith.minimumf %67, %68 : vector<8x32xf32>
    %70 = math.exp %69 : vector<8x32xf32>
    %cst_67 = arith.constant 2.000000e+00 : f32
    %71 = vector.broadcast %cst_67 : f32 to vector<8x32xf32>
    %72 = arith.addf %70, %71 : vector<8x32xf32>
    %73 = arith.mulf %70, %72 : vector<8x32xf32>
    %cst_68 = arith.constant 2.000000e+00 : f32
    %74 = vector.broadcast %cst_68 : f32 to vector<8x32xf32>
    %75 = arith.addf %73, %74 : vector<8x32xf32>
    %76 = tpu.reciprocal %75 {approx = true} : vector<8x32xf32> -> vector<8x32xf32>
    %cst_69 = arith.constant 2.000000e+00 : f32
    %77 = vector.broadcast %cst_69 : f32 to vector<8x32xf32>
    %78 = arith.mulf %77, %76 : vector<8x32xf32>
    %cst_70 = arith.constant 1.000000e+00 : f32
    %79 = vector.broadcast %cst_70 : f32 to vector<8x32xf32>
    %80 = arith.subf %79, %78 : vector<8x32xf32>
    %81 = arith.mulf %67, %80 : vector<8x32xf32>
    %c0_71 = arith.constant 0 : index
    %c0_72 = arith.constant 0 : index
    %c0_73 = arith.constant 0 : index
    %82 = vector.load %arg9[%c0_71, %c0_72, %c0_73] : memref<1x8x32xf32, #tpu.memory_space<vmem>>, vector<1x8x32xf32>
    %83 = vector.shape_cast %82 : vector<1x8x32xf32> to vector<8x32xf32>
    %84 = vector.shape_cast %81 : vector<8x32xf32> to vector<1x8x32xf32>
    tpu.vector_store %arg9[%c0_71, %c0_72, %c0_73], %84 {strides = array<i32>} : memref<1x8x32xf32, #tpu.memory_space<vmem>>, vector<1x8x32xf32>,
    return
  }
  func.func @transform_0(%arg0: i32, %arg1: i32) -> (i32, i32, i32, i32) {
    %c0_i32 = arith.constant 0 : i32
    %c0_i32_0 = arith.constant 0 : i32
    %c0_i32_1 = arith.constant 0 : i32
    %c0_i32_2 = arith.constant 0 : i32
    return %arg0, %c0_i32, %c0_i32_0, %c0_i32_1 : i32, i32, i32, i32
  }
  func.func @transform_1(%arg0: i32, %arg1: i32) -> (i32, i32) {
    %c0_i32 = arith.constant 0 : i32
    %c0_i32_0 = arith.constant 0 : i32
    return %arg1, %c0_i32 : i32, i32
  }
  func.func @transform_2(%arg0: i32, %arg1: i32) -> (i32, i32) {
    %c0_i32 = arith.constant 0 : i32
    %c0_i32_0 = arith.constant 0 : i32
    return %arg1, %c0_i32 : i32, i32
  }
  func.func @transform_3(%arg0: i32, %arg1: i32) -> (i32, i32) {
    %c0_i32 = arith.constant 0 : i32
    %c0_i32_0 = arith.constant 0 : i32
    return %c0_i32, %arg1 : i32, i32
  }
  func.func @transform_4(%arg0: i32, %arg1: i32) -> (i32, i32) {
    %c0_i32 = arith.constant 0 : i32
    %c0_i32_0 = arith.constant 0 : i32
    return %arg1, %c0_i32 : i32, i32
  }
  func.func @transform_5(%arg0: i32, %arg1: i32) -> (i32, i32) {
    %c0_i32 = arith.constant 0 : i32
    %c0_i32_0 = arith.constant 0 : i32
    %c0_i32_1 = arith.constant 0 : i32
    return %c0_i32, %c0_i32_0 : i32, i32
  }
  func.func @transform_6(%arg0: i32, %arg1: i32) -> (i32, i32) {
    %c0_i32 = arith.constant 0 : i32
    %c0_i32_0 = arith.constant 0 : i32
    %c0_i32_1 = arith.constant 0 : i32
    return %c0_i32, %c0_i32_0 : i32, i32
  }
  func.func @transform_7(%arg0: i32, %arg1: i32) -> (i32, i32, i32) {
    %c0_i32 = arith.constant 0 : i32
    %c0_i32_0 = arith.constant 0 : i32
    return %arg0, %arg1, %c0_i32 : i32, i32, i32
  }
}

</mosaic_0001>

<llo_original>
// kernel: tpu_custom_call.1
$region0: #{tpu_custom_call.1}
  #allocation0 [shape = 'u32[]', space=smem, size = 0x4, offset = 0x4, fixed_abs, tag = 'smem constant byte address 0x4 - core index']
  #allocation1 [shape = 'u32[144,128]{1,0:T(1,128)}', space=vmem, size = 0x12000, scoped, tag = 'internal scratch']
  #allocation2 [shape = 'bf16[13,32]{1,0:T(8,128)(2,1)}', space=vmem, size = 0x1000, scoped, tag = 'scratch operand']
  %s0 = inlined_call_operand.vmem [shape: bf16[2,1,4,16], index: 0, kind: input, shape index: {}]
  %s1 = inlined_call_operand.vmem [shape: bf16[8,13], index: 1, kind: input, shape index: {}]
  %s2 = inlined_call_operand.vmem [shape: f32[8,2], index: 2, kind: input, shape index: {}]
  %s3 = inlined_call_operand.vmem [shape: f32[4,8], index: 3, kind: input, shape index: {}]
  %s4 = inlined_call_operand.vmem [shape: f32[8,4], index: 4, kind: input, shape index: {}]
  %s5 = inlined_call_operand.vmem [shape: f32[32,2], index: 5, kind: input, shape index: {}]
  %s6 = inlined_call_operand.vmem [shape: f32[2,32], index: 6, kind: input, shape index: {}]
  %s7 = inlined_call_operand.hbm [shape: f32[1,8,32], index: 7, kind: output, shape index: {}]
  %s8 = sld [smem:[#allocation0]]
  $region38: #{tpu_custom_call.1} parent=0
    _
  %s10 = ssub.s32 1, %s8
  %s11 = scalar_select 0, %s10, %s8
  $region1: #{tpu_custom_call.1} parent=0
    #allocation3 [shape = 'u8[4096]{0}', space=vmem, size = 0x1000, scoped, tag = 'output window, operand 0, single buffered']
    #allocation4 [shape = 's32[1]{0}', space=sflag, size = 0x4, scoped, tag = 'scoped memory for tpu_custom_call.1']
    %12 = vsyncpa [#allocation4], 0
    // Predicated region
    $region2: #{tpu_custom_call.1} parent=1 // pred_check
      _
    $region3: #{tpu_custom_call.1} parent=1 // pred_check_branch
      %14 = sbr.rel (0) target = $region5
    $region4: #{tpu_custom_call.1} parent=1 // pred_region
      _
    $region5: #{tpu_custom_call.1} parent=1 // pred_fallthru
      _
    // Predicated region
    $region6: #{tpu_custom_call.1} parent=1 // pred_check
      _
    $region7: #{tpu_custom_call.1} parent=1 // pred_check_branch
      %16 = sbr.rel (0) target = $region9
    $region8: #{tpu_custom_call.1} parent=1 // pred_region
      _
    $region9: #{tpu_custom_call.1} parent=1 // pred_fallthru
      _
    // Predicated region
    $region10: #{tpu_custom_call.1} parent=1 // pred_check
      _
    $region11: #{tpu_custom_call.1} parent=1 // pred_check_branch
      %18 = sbr.rel (0) target = $region13
    $region12: #{tpu_custom_call.1} parent=1 // pred_region
      _
    $region13: #{tpu_custom_call.1} parent=1 // pred_fallthru
      _
    // Predicated region
    $region14: #{tpu_custom_call.1} parent=1 // pred_check
      _
    $region15: #{tpu_custom_call.1} parent=1 // pred_check_branch
      %20 = sbr.rel (0) target = $region17
    $region16: #{tpu_custom_call.1} parent=1 // pred_region
      _
    $region17: #{tpu_custom_call.1} parent=1 // pred_fallthru
      _
    // Predicated region
    $region18: #{tpu_custom_call.1} parent=1 // pred_check
      _
    $region19: #{tpu_custom_call.1} parent=1 // pred_check_branch
      %22 = sbr.rel (0) target = $region21
    $region20: #{tpu_custom_call.1} parent=1 // pred_region
      _
    $region21: #{tpu_custom_call.1} parent=1 // pred_fallthru
      _
    // Predicated region
    $region22: #{tpu_custom_call.1} parent=1 // pred_check
      _
    $region23: #{tpu_custom_call.1} parent=1 // pred_check_branch
      %24 = sbr.rel (0) target = $region25
    $region24: #{tpu_custom_call.1} parent=1 // pred_region
      _
    $region25: #{tpu_custom_call.1} parent=1 // pred_fallthru
      _
    // Predicated region
    $region26: #{tpu_custom_call.1} parent=1 // pred_check
      _
    $region27: #{tpu_custom_call.1} parent=1 // pred_check_branch
      %26 = sbr.rel (0) target = $region29
    $region28: #{tpu_custom_call.1} parent=1 // pred_region
      _
    $region29: #{tpu_custom_call.1} parent=1 // pred_fallthru
      _
    %vm29 = vcmask 256002
    %vm30 = vsmask.f32 2304
    %vm31 = vmand %vm29, %vm30
    %v32 = vld [vmem:[#allocation2 + $0x4] sm:$0x4]
    %v33 = vsel %vm31, 1065369472, %v32
    %34 = vst [vmem:[#allocation2 + $0x4] sm:$0x4] %v33
    %vm35 = vcmask 9216
    %36 = vst.msk [vmem:[#allocation2] sm:$0x3] %vm35, 0
    %v37 = vld [vmem:[%s0] sm:$0x3]
    %v40 = vunpack.c.l.s4 1983009808
    %v41 = vunpack.c.0.s8 %v40
    %v42 = vlaneseq
    %v43 = vshrl.u32 %v42, 7
    %v44 = vsub.s32 %v41, %v43
    %v45 = vrot.slane %v37, %v44
    %46 = vrot.lane.b32.xlu0 %v45, 2
    %v47 = vpop.permute.xlu0 %46
    %vm49 = vcmask 123920
    %50 = vst.msk [vmem:[#allocation2] sm:$0x3] %vm49, %v47
    %vm51 = vcmask 3074
    %52 = vst.msk [vmem:[#allocation2] sm:$0xc] %vm51, 0
    %v53 = vld [vmem:[%s0] sm:$0x3]
    %v55 = vcombine.low %v53, %v53
    %v57 = vunpack.c.l.s4 1983009808
    %v58 = vunpack.c.0.s8 %v57
    %v59 = vlaneseq
    %v60 = vshrl.u32 %v59, 7
    %v61 = vsub.s32 %v58, %v60
    %v62 = vrot.slane %v55, %v61
    %63 = vrot.lane.b32.xlu0 %v62, 1
    %v64 = vpop.permute.xlu0 %63
    %vm66 = vcmask 125962
    %67 = vst.msk [vmem:[#allocation2] sm:$0xc] %vm66, %v64
    %v68 = vld [vmem:[%s0] sm:$0x3]
    %vm69 = vcmask 123904
    %70 = vst.msk [vmem:[#allocation2 + $0x4] sm:$0x3] %vm69, %v68
    %vm71 = vcmask 140416
    %72 = vst.msk [vmem:[#allocation2] sm:$0x3] %vm71, 0
    %s73 = scalar_lea.vmem %s0, 2
    %v74 = vld [vmem:[%s73] sm:$0x3]
    %v77 = vunpack.c.l.s4 1983009808
    %v78 = vunpack.c.0.s8 %v77
    %v79 = vlaneseq
    %v80 = vshrl.u32 %v79, 7
    %v81 = vsub.s32 %v78, %v80
    %v82 = vrot.slane %v74, %v81
    %83 = vrot.lane.b32.xlu0 %v82, 18
    %v84 = vpop.permute.xlu0 %83
    %vm86 = vcmask 255120
    %87 = vst.msk [vmem:[#allocation2] sm:$0x3] %vm86, %v84
    %vm88 = vcmask 134274
    %89 = vst.msk [vmem:[#allocation2] sm:$0xc] %vm88, 0
    %v90 = vld [vmem:[%s73] sm:$0x3]
    %v92 = vcombine.low %v90, %v90
    %v94 = vunpack.c.l.s4 1983009808
    %v95 = vunpack.c.0.s8 %v94
    %v96 = vlaneseq
    %v97 = vshrl.u32 %v96, 7
    %v98 = vsub.s32 %v95, %v97
    %v99 = vrot.slane %v92, %v98
    %100 = vrot.lane.b32.xlu0 %v99, 17
    %v101 = vpop.permute.xlu0 %100
    %vm103 = vcmask 257162
    %104 = vst.msk [vmem:[#allocation2] sm:$0xc] %vm103, %v101
    %v105 = vld [vmem:[%s73] sm:$0x3]
    %v108 = vunpack.c.l.s4 1983009808
    %v109 = vunpack.c.0.s8 %v108
    %v110 = vlaneseq
    %v111 = vshrl.u32 %v110, 7
    %v112 = vsub.s32 %v109, %v111
    %v113 = vrot.slane %v105, %v112
    %114 = vrot.lane.b32.xlu0 %v113, 16
    %v115 = vpop.permute.xlu0 %114
    %vm117 = vcmask 255104
    %118 = vst.msk [vmem:[#allocation2 + $0x4] sm:$0x3] %vm117, %v115
    %v119 = vld [vmem:[%s1] sm:$0xf]
    %v120 = vld [vmem:[#allocation2] sm:$0xf]
    %v121 = vld [vmem:[#allocation2 + $0x4] sm:$0x7]
    %v124 = vunpack.c.l.b16 %v120
    %v125 = vunpack.c.l.b16 %v121
    %v126 = vpack.c.b16 %v125, %v124
    %vm127 = vcmask 105472
    %v129 = vsel %vm127, %v119, 0
    %vm131 = vcmask 1045504
    %vm132 = vcmask 1046528
    %v133 = vsel %vm131, 4294967295, 65535
    %v134 = vsel %vm132, %v133, 0
    %v136 = vand.u32 %v126, %v134
    %138 = vmatprep.subr.bf16.mxu0 0
    %139 = vmatpush1.bf16.msra.mxu0 %v136
    %140 = vmatprep.subr.bf16.mxu0 0
    %141 = vmatpush1.bf16.msra.mxu0 0
    %142 = vmatprep.subr.bf16.mxu0 0
    %143 = vmatpush1.bf16.msra.mxu0 0
    %144 = vmatprep.subr.bf16.mxu0 0
    %145 = vmatpush1.bf16.msra.mxu0 0
    %146 = vmatprep.subr.bf16.mxu0 0
    %147 = vmatpush1.bf16.msra.mxu0 0
    %148 = vmatprep.subr.bf16.mxu0 0
    %149 = vmatpush1.bf16.msra.mxu0 0
    %150 = vmatprep.subr.bf16.mxu0 0
    %151 = vmatpush1.bf16.msra.mxu0 0
    %152 = vmatprep.subr.bf16.mxu0 0
    %153 = vmatpush1.bf16.msra.mxu0 0
    %154 = vmatprep.subr.bf16.mxu0 0
    %155 = vmatpush1.bf16.msra.mxu0 0
    %156 = vmatprep.subr.bf16.mxu0 0
    %157 = vmatpush1.bf16.msra.mxu0 0
    %158 = vmatprep.subr.bf16.mxu0 0
    %159 = vmatpush1.bf16.msra.mxu0 0
    %160 = vmatprep.subr.bf16.mxu0 0
    %161 = vmatpush1.bf16.msra.mxu0 0
    %162 = vmatprep.subr.bf16.mxu0 0
    %163 = vmatpush1.bf16.msra.mxu0 0
    %164 = vmatprep.subr.bf16.mxu0 0
    %165 = vmatpush1.bf16.msra.mxu0 0
    %166 = vmatprep.subr.bf16.mxu0 0
    %167 = vmatpush1.bf16.msra.mxu0 0
    %168 = vmatprep.subr.bf16.mxu0 0
    %169 = vmatpush1.bf16.msra.mxu0 0
    %170 = vmatprep.mubr.bf16.mxu0 0
    %171 = vmatmul.mubr.bf16.gmra.mrb[0].mxu0 %v129
    %v172 = vpop.f32.mrb[0].mxu0
    %v173 = vadd.f32 0.0, %v172
    %v174 = vpop.f32.mrb[0].mxu0
    %v175 = vpop.f32.mrb[0].mxu0
    %v176 = vpop.f32.mrb[0].mxu0
    %177 = vdwg.mxu0
    %v178 = vld [vmem:[%s5] sm:$0xff]
    %v179 = vld [vmem:[%s5 + $0x8] sm:$0xff]
    %v180 = vld [vmem:[%s5 + $0x10] sm:$0xff]
    %v181 = vld [vmem:[%s5 + $0x18] sm:$0xff]
    %vm182 = vcmask 261120
    %v184 = vsel %vm182, %v173, 0
    %186 = vmatprep.subr.mxu0 0.0
    %187 = vmatpush1.msra.mxu0 %v178
    %188 = vmatprep.subr.mxu0 0.0
    %189 = vmatpush1.msra.mxu0 %v179
    %190 = vmatprep.subr.mxu0 0.0
    %191 = vmatpush1.msra.mxu0 %v180
    %192 = vmatprep.subr.mxu0 0.0
    %193 = vmatpush1.msra.mxu0 %v181
    %194 = vmatprep.subr.mxu0 0.0
    %195 = vmatpush1.msra.mxu0 0.0
    %196 = vmatprep.subr.mxu0 0.0
    %197 = vmatpush1.msra.mxu0 0.0
    %198 = vmatprep.subr.mxu0 0.0
    %199 = vmatpush1.msra.mxu0 0.0
    %200 = vmatprep.subr.mxu0 0.0
    %201 = vmatpush1.msra.mxu0 0.0
    %202 = vmatprep.subr.mxu0 0.0
    %203 = vmatpush1.msra.mxu0 0.0
    %204 = vmatprep.subr.mxu0 0.0
    %205 = vmatpush1.msra.mxu0 0.0
    %206 = vmatprep.subr.mxu0 0.0
    %207 = vmatpush1.msra.mxu0 0.0
    %208 = vmatprep.subr.mxu0 0.0
    %209 = vmatpush1.msra.mxu0 0.0
    %210 = vmatprep.subr.mxu0 0.0
    %211 = vmatpush1.msra.mxu0 0.0
    %212 = vmatprep.subr.mxu0 0.0
    %213 = vmatpush1.msra.mxu0 0.0
    %214 = vmatprep.subr.mxu0 0.0
    %215 = vmatpush1.msra.mxu0 0.0
    %216 = vmatprep.subr.mxu0 0.0
    %217 = vmatpush1.msra.mxu0 0.0
    %218 = vmatprep.subr.mxu0 0.0
    %219 = vmatpush1.msra.mxu0 0.0
    %220 = vmatprep.subr.mxu0 0.0
    %221 = vmatpush1.msra.mxu0 0.0
    %222 = vmatprep.subr.mxu0 0.0
    %223 = vmatpush1.msra.mxu0 0.0
    %224 = vmatprep.subr.mxu0 0.0
    %225 = vmatpush1.msra.mxu0 0.0
    %226 = vmatprep.subr.mxu0 0.0
    %227 = vmatpush1.msra.mxu0 0.0
    %228 = vmatprep.subr.mxu0 0.0
    %229 = vmatpush1.msra.mxu0 0.0
    %230 = vmatprep.subr.mxu0 0.0
    %231 = vmatpush1.msra.mxu0 0.0
    %232 = vmatprep.subr.mxu0 0.0
    %233 = vmatpush1.msra.mxu0 0.0
    %234 = vmatprep.subr.mxu0 0.0
    %235 = vmatpush1.msra.mxu0 0.0
    %236 = vmatprep.subr.mxu0 0.0
    %237 = vmatpush1.msra.mxu0 0.0
    %238 = vmatprep.subr.mxu0 0.0
    %239 = vmatpush1.msra.mxu0 0.0
    %240 = vmatprep.subr.mxu0 0.0
    %241 = vmatpush1.msra.mxu0 0.0
    %242 = vmatprep.subr.mxu0 0.0
    %243 = vmatpush1.msra.mxu0 0.0
    %244 = vmatprep.subr.mxu0 0.0
    %245 = vmatpush1.msra.mxu0 0.0
    %246 = vmatprep.subr.mxu0 0.0
    %247 = vmatpush1.msra.mxu0 0.0
    %248 = vmatprep.subr.mxu0 0.0
    %249 = vmatpush1.msra.mxu0 0.0
    %250 = vmatprep.mubr.f32.mxu0 0.0
    %251 = vmatmul.mubr.f32.gmra.mrb[0].mxu0 %v184
    %v252 = vpop.f32.mrb[0].mxu0
    %v253 = vadd.f32 0.0, %v252
    %v254 = vpop.f32.mrb[0].mxu0
    %255 = vdwg.mxu0
    %v256 = vmul.f32 %v173, %v173
    %v258 = vsel %vm182, %v256, 0
    %260 = vmatprep.subr.mxu0 0.0
    %261 = vmatpush1.msra.mxu0 %v178
    %262 = vmatprep.subr.mxu0 0.0
    %263 = vmatpush1.msra.mxu0 %v179
    %264 = vmatprep.subr.mxu0 0.0
    %265 = vmatpush1.msra.mxu0 %v180
    %266 = vmatprep.subr.mxu0 0.0
    %267 = vmatpush1.msra.mxu0 %v181
    %268 = vmatprep.subr.mxu0 0.0
    %269 = vmatpush1.msra.mxu0 0.0
    %270 = vmatprep.subr.mxu0 0.0
    %271 = vmatpush1.msra.mxu0 0.0
    %272 = vmatprep.subr.mxu0 0.0
    %273 = vmatpush1.msra.mxu0 0.0
    %274 = vmatprep.subr.mxu0 0.0
    %275 = vmatpush1.msra.mxu0 0.0
    %276 = vmatprep.subr.mxu0 0.0
    %277 = vmatpush1.msra.mxu0 0.0
    %278 = vmatprep.subr.mxu0 0.0
    %279 = vmatpush1.msra.mxu0 0.0
    %280 = vmatprep.subr.mxu0 0.0
    %281 = vmatpush1.msra.mxu0 0.0
    %282 = vmatprep.subr.mxu0 0.0
    %283 = vmatpush1.msra.mxu0 0.0
    %284 = vmatprep.subr.mxu0 0.0
    %285 = vmatpush1.msra.mxu0 0.0
    %286 = vmatprep.subr.mxu0 0.0
    %287 = vmatpush1.msra.mxu0 0.0
    %288 = vmatprep.subr.mxu0 0.0
    %289 = vmatpush1.msra.mxu0 0.0
    %290 = vmatprep.subr.mxu0 0.0
    %291 = vmatpush1.msra.mxu0 0.0
    %292 = vmatprep.subr.mxu0 0.0
    %293 = vmatpush1.msra.mxu0 0.0
    %294 = vmatprep.subr.mxu0 0.0
    %295 = vmatpush1.msra.mxu0 0.0
    %296 = vmatprep.subr.mxu0 0.0
    %297 = vmatpush1.msra.mxu0 0.0
    %298 = vmatprep.subr.mxu0 0.0
    %299 = vmatpush1.msra.mxu0 0.0
    %300 = vmatprep.subr.mxu0 0.0
    %301 = vmatpush1.msra.mxu0 0.0
    %302 = vmatprep.subr.mxu0 0.0
    %303 = vmatpush1.msra.mxu0 0.0
    %304 = vmatprep.subr.mxu0 0.0
    %305 = vmatpush1.msra.mxu0 0.0
    %306 = vmatprep.subr.mxu0 0.0
    %307 = vmatpush1.msra.mxu0 0.0
    %308 = vmatprep.subr.mxu0 0.0
    %309 = vmatpush1.msra.mxu0 0.0
    %310 = vmatprep.subr.mxu0 0.0
    %311 = vmatpush1.msra.mxu0 0.0
    %312 = vmatprep.subr.mxu0 0.0
    %313 = vmatpush1.msra.mxu0 0.0
    %314 = vmatprep.subr.mxu0 0.0
    %315 = vmatpush1.msra.mxu0 0.0
    %316 = vmatprep.subr.mxu0 0.0
    %317 = vmatpush1.msra.mxu0 0.0
    %318 = vmatprep.subr.mxu0 0.0
    %319 = vmatpush1.msra.mxu0 0.0
    %320 = vmatprep.subr.mxu0 0.0
    %321 = vmatpush1.msra.mxu0 0.0
    %322 = vmatprep.subr.mxu0 0.0
    %323 = vmatpush1.msra.mxu0 0.0
    %324 = vmatprep.mubr.f32.mxu0 0.0
    %325 = vmatmul.mubr.f32.gmra.mrb[0].mxu0 %v258
    %v326 = vpop.f32.mrb[0].mxu0
    %v327 = vadd.f32 0.0, %v326
    %v328 = vpop.f32.mrb[0].mxu0
    %329 = vdwg.mxu0
    %v330 = vld [vmem:[%s3] sm:$0xf]
    %332 = vrot.lane.b32.xlu0 %v327, 2
    %v333 = vpop.permute.xlu0 %332
    %vm335 = vcmask 15360
    %v336 = vsel %vm335, %v253, %v333
    %vm337 = vcmask 64512
    %v339 = vsel %vm337, %v330, 0
    %341 = vmatprep.subr.mxu0 0.0
    %342 = vmatpush1.msra.mxu0 %v336
    %343 = vmatprep.subr.mxu0 0.0
    %344 = vmatpush1.msra.mxu0 0.0
    %345 = vmatprep.subr.mxu0 0.0
    %346 = vmatpush1.msra.mxu0 0.0
    %347 = vmatprep.subr.mxu0 0.0
    %348 = vmatpush1.msra.mxu0 0.0
    %349 = vmatprep.subr.mxu0 0.0
    %350 = vmatpush1.msra.mxu0 0.0
    %351 = vmatprep.subr.mxu0 0.0
    %352 = vmatpush1.msra.mxu0 0.0
    %353 = vmatprep.subr.mxu0 0.0
    %354 = vmatpush1.msra.mxu0 0.0
    %355 = vmatprep.subr.mxu0 0.0
    %356 = vmatpush1.msra.mxu0 0.0
    %357 = vmatprep.subr.mxu0 0.0
    %358 = vmatpush1.msra.mxu0 0.0
    %359 = vmatprep.subr.mxu0 0.0
    %360 = vmatpush1.msra.mxu0 0.0
    %361 = vmatprep.subr.mxu0 0.0
    %362 = vmatpush1.msra.mxu0 0.0
    %363 = vmatprep.subr.mxu0 0.0
    %364 = vmatpush1.msra.mxu0 0.0
    %365 = vmatprep.subr.mxu0 0.0
    %366 = vmatpush1.msra.mxu0 0.0
    %367 = vmatprep.subr.mxu0 0.0
    %368 = vmatpush1.msra.mxu0 0.0
    %369 = vmatprep.subr.mxu0 0.0
    %370 = vmatpush1.msra.mxu0 0.0
    %371 = vmatprep.subr.mxu0 0.0
    %372 = vmatpush1.msra.mxu0 0.0
    %373 = vmatprep.subr.mxu0 0.0
    %374 = vmatpush1.msra.mxu0 0.0
    %375 = vmatprep.subr.mxu0 0.0
    %376 = vmatpush1.msra.mxu0 0.0
    %377 = vmatprep.subr.mxu0 0.0
    %378 = vmatpush1.msra.mxu0 0.0
    %379 = vmatprep.subr.mxu0 0.0
    %380 = vmatpush1.msra.mxu0 0.0
    %381 = vmatprep.subr.mxu0 0.0
    %382 = vmatpush1.msra.mxu0 0.0
    %383 = vmatprep.subr.mxu0 0.0
    %384 = vmatpush1.msra.mxu0 0.0
    %385 = vmatprep.subr.mxu0 0.0
    %386 = vmatpush1.msra.mxu0 0.0
    %387 = vmatprep.subr.mxu0 0.0
    %388 = vmatpush1.msra.mxu0 0.0
    %389 = vmatprep.subr.mxu0 0.0
    %390 = vmatpush1.msra.mxu0 0.0
    %391 = vmatprep.subr.mxu0 0.0
    %392 = vmatpush1.msra.mxu0 0.0
    %393 = vmatprep.subr.mxu0 0.0
    %394 = vmatpush1.msra.mxu0 0.0
    %395 = vmatprep.subr.mxu0 0.0
    %396 = vmatpush1.msra.mxu0 0.0
    %397 = vmatprep.subr.mxu0 0.0
    %398 = vmatpush1.msra.mxu0 0.0
    %399 = vmatprep.subr.mxu0 0.0
    %400 = vmatpush1.msra.mxu0 0.0
    %401 = vmatprep.subr.mxu0 0.0
    %402 = vmatpush1.msra.mxu0 0.0
    %403 = vmatprep.subr.mxu0 0.0
    %404 = vmatpush1.msra.mxu0 0.0
    %405 = vmatprep.mubr.f32.mxu0 0.0
    %406 = vmatmul.mubr.f32.gmra.mrb[0].mxu0 %v339
    %v407 = vpop.f32.mrb[0].mxu0
    %v408 = vadd.f32 0.0, %v407
    %v409 = vpop.f32.mrb[0].mxu0
    %410 = vdwg.mxu0
    %v411 = vmul.f32 %v408, 0.03125
    %v412 = vmul.f32 %v411, %v411
    %414 = vrot.lane.b32.xlu0 %v412, 2
    %v415 = vpop.permute.xlu0 %414
    %v417 = vsub.f32 %v411, %v415
    %v418 = vmax.f32 %v417, 0.0
    %v419 = vadd.f32 %v418, 1e-05
    %v420 = vrsqrt.pop %v419
    %v421 = vld [vmem:[%s4] sm:$0xff]
    %v422 = vsel %vm335, %v411, %v420
    %vm423 = vcmask 31744
    %v425 = vsel %vm423, %v421, 0
    %vm427 = vcmask 1043456
    %v429 = vsel %vm427, %v422, 0
    %431 = vmatprep.subr.mxu0 0.0
    %432 = vmatpush1.msra.mxu0 %v429
    %433 = vmatprep.subr.mxu0 0.0
    %434 = vmatpush1.msra.mxu0 0.0
    %435 = vmatprep.subr.mxu0 0.0
    %436 = vmatpush1.msra.mxu0 0.0
    %437 = vmatprep.subr.mxu0 0.0
    %438 = vmatpush1.msra.mxu0 0.0
    %439 = vmatprep.subr.mxu0 0.0
    %440 = vmatpush1.msra.mxu0 0.0
    %441 = vmatprep.subr.mxu0 0.0
    %442 = vmatpush1.msra.mxu0 0.0
    %443 = vmatprep.subr.mxu0 0.0
    %444 = vmatpush1.msra.mxu0 0.0
    %445 = vmatprep.subr.mxu0 0.0
    %446 = vmatpush1.msra.mxu0 0.0
    %447 = vmatprep.subr.mxu0 0.0
    %448 = vmatpush1.msra.mxu0 0.0
    %449 = vmatprep.subr.mxu0 0.0
    %450 = vmatpush1.msra.mxu0 0.0
    %451 = vmatprep.subr.mxu0 0.0
    %452 = vmatpush1.msra.mxu0 0.0
    %453 = vmatprep.subr.mxu0 0.0
    %454 = vmatpush1.msra.mxu0 0.0
    %455 = vmatprep.subr.mxu0 0.0
    %456 = vmatpush1.msra.mxu0 0.0
    %457 = vmatprep.subr.mxu0 0.0
    %458 = vmatpush1.msra.mxu0 0.0
    %459 = vmatprep.subr.mxu0 0.0
    %460 = vmatpush1.msra.mxu0 0.0
    %461 = vmatprep.subr.mxu0 0.0
    %462 = vmatpush1.msra.mxu0 0.0
    %463 = vmatprep.subr.mxu0 0.0
    %464 = vmatpush1.msra.mxu0 0.0
    %465 = vmatprep.subr.mxu0 0.0
    %466 = vmatpush1.msra.mxu0 0.0
    %467 = vmatprep.subr.mxu0 0.0
    %468 = vmatpush1.msra.mxu0 0.0
    %469 = vmatprep.subr.mxu0 0.0
    %470 = vmatpush1.msra.mxu0 0.0
    %471 = vmatprep.subr.mxu0 0.0
    %472 = vmatpush1.msra.mxu0 0.0
    %473 = vmatprep.subr.mxu0 0.0
    %474 = vmatpush1.msra.mxu0 0.0
    %475 = vmatprep.subr.mxu0 0.0
    %476 = vmatpush1.msra.mxu0 0.0
    %477 = vmatprep.subr.mxu0 0.0
    %478 = vmatpush1.msra.mxu0 0.0
    %479 = vmatprep.subr.mxu0 0.0
    %480 = vmatpush1.msra.mxu0 0.0
    %481 = vmatprep.subr.mxu0 0.0
    %482 = vmatpush1.msra.mxu0 0.0
    %483 = vmatprep.subr.mxu0 0.0
    %484 = vmatpush1.msra.mxu0 0.0
    %485 = vmatprep.subr.mxu0 0.0
    %486 = vmatpush1.msra.mxu0 0.0
    %487 = vmatprep.subr.mxu0 0.0
    %488 = vmatpush1.msra.mxu0 0.0
    %489 = vmatprep.subr.mxu0 0.0
    %490 = vmatpush1.msra.mxu0 0.0
    %491 = vmatprep.subr.mxu0 0.0
    %492 = vmatpush1.msra.mxu0 0.0
    %493 = vmatprep.subr.mxu0 0.0
    %494 = vmatpush1.msra.mxu0 0.0
    %495 = vmatprep.mubr.f32.mxu0 0.0
    %496 = vmatmul.mubr.f32.gmra.mrb[0].mxu0 %v425
    %v497 = vpop.f32.mrb[0].mxu0
    %v498 = vadd.f32 0.0, %v497
    %v499 = vpop.f32.mrb[0].mxu0
    %500 = vdwg.mxu0
    %v501 = vld [vmem:[%s2] sm:$0xff]
    %503 = vset.pattern.permute.xlu0 0
    %504 = vperm.xlu0 %503, %v501
    %v505 = vpop.permute.xlu0 %504
    %v507 = vmul.f32 %v498, %v505
    %509 = vrot.lane.b32.xlu0 %v507, 126
    %v510 = vpop.permute.xlu0 %509
    %v512 = vmul.f32 %v498, %v510
    %513 = vset.pattern.permute.xlu0 1
    %514 = vperm.xlu0 %513, %v501
    %v515 = vpop.permute.xlu0 %514
    %v517 = vsub.f32 %v515, %v512
    %519 = vrot.lane.b32.xlu0 %v517, 2
    %v520 = vpop.permute.xlu0 %519
    %v521 = vld [vmem:[%s6] sm:$0x3]
    %522 = vrot.lane.b32.xlu0 %v520, 126
    %v523 = vpop.permute.xlu0 %522
    %v524 = vsel %vm335, %v510, 0
    %v526 = vsel %vm335, %v523, 0
    %vm528 = vcmask 1041408
    %v530 = vsel %vm528, %v521, 0
    %532 = vmatprep.subr.mxu0 0.0
    %533 = vmatpush1.msra.mxu0 %v530
    %534 = vmatprep.subr.mxu0 0.0
    %535 = vmatpush1.msra.mxu0 0.0
    %536 = vmatprep.subr.mxu0 0.0
    %537 = vmatpush1.msra.mxu0 0.0
    %538 = vmatprep.subr.mxu0 0.0
    %539 = vmatpush1.msra.mxu0 0.0
    %540 = vmatprep.subr.mxu0 0.0
    %541 = vmatpush1.msra.mxu0 0.0
    %542 = vmatprep.subr.mxu0 0.0
    %543 = vmatpush1.msra.mxu0 0.0
    %544 = vmatprep.subr.mxu0 0.0
    %545 = vmatpush1.msra.mxu0 0.0
    %546 = vmatprep.subr.mxu0 0.0
    %547 = vmatpush1.msra.mxu0 0.0
    %548 = vmatprep.subr.mxu0 0.0
    %549 = vmatpush1.msra.mxu0 0.0
    %550 = vmatprep.subr.mxu0 0.0
    %551 = vmatpush1.msra.mxu0 0.0
    %552 = vmatprep.subr.mxu0 0.0
    %553 = vmatpush1.msra.mxu0 0.0
    %554 = vmatprep.subr.mxu0 0.0
    %555 = vmatpush1.msra.mxu0 0.0
    %556 = vmatprep.subr.mxu0 0.0
    %557 = vmatpush1.msra.mxu0 0.0
    %558 = vmatprep.subr.mxu0 0.0
    %559 = vmatpush1.msra.mxu0 0.0
    %560 = vmatprep.subr.mxu0 0.0
    %561 = vmatpush1.msra.mxu0 0.0
    %562 = vmatprep.subr.mxu0 0.0
    %563 = vmatpush1.msra.mxu0 0.0
    %564 = vmatprep.subr.mxu0 0.0
    %565 = vmatpush1.msra.mxu0 0.0
    %566 = vmatprep.subr.mxu0 0.0
    %567 = vmatpush1.msra.mxu0 0.0
    %568 = vmatprep.subr.mxu0 0.0
    %569 = vmatpush1.msra.mxu0 0.0
    %570 = vmatprep.subr.mxu0 0.0
    %571 = vmatpush1.msra.mxu0 0.0
    %572 = vmatprep.subr.mxu0 0.0
    %573 = vmatpush1.msra.mxu0 0.0
    %574 = vmatprep.subr.mxu0 0.0
    %575 = vmatpush1.msra.mxu0 0.0
    %576 = vmatprep.subr.mxu0 0.0
    %577 = vmatpush1.msra.mxu0 0.0
    %578 = vmatprep.subr.mxu0 0.0
    %579 = vmatpush1.msra.mxu0 0.0
    %580 = vmatprep.subr.mxu0 0.0
    %581 = vmatpush1.msra.mxu0 0.0
    %582 = vmatprep.subr.mxu0 0.0
    %583 = vmatpush1.msra.mxu0 0.0
    %584 = vmatprep.subr.mxu0 0.0
    %585 = vmatpush1.msra.mxu0 0.0
    %586 = vmatprep.subr.mxu0 0.0
    %587 = vmatpush1.msra.mxu0 0.0
    %588 = vmatprep.subr.mxu0 0.0
    %589 = vmatpush1.msra.mxu0 0.0
    %590 = vmatprep.subr.mxu0 0.0
    %591 = vmatpush1.msra.mxu0 0.0
    %592 = vmatprep.subr.mxu0 0.0
    %593 = vmatpush1.msra.mxu0 0.0
    %594 = vmatprep.subr.mxu0 0.0
    %595 = vmatpush1.msra.mxu0 0.0
    %596 = vmatprep.mubr.f32.mxu0 0.0
    %597 = vmatmul.mubr.f32.gmra.mrb[0].mxu0 %v524
    %v598 = vpop.f32.mrb[0].mxu0
    %v599 = vadd.f32 0.0, %v598
    %v600 = vpop.f32.mrb[0].mxu0
    %601 = vmatprep.mubr.f32.mxu0 0.0
    %602 = vmatmul.mubr.f32.gmra.mrb[0].mxu0 %v526
    %v603 = vpop.f32.mrb[0].mxu0
    %v604 = vadd.f32 0.0, %v603
    %v605 = vpop.f32.mrb[0].mxu0
    %606 = vdwg.mxu0
    %v607 = vmul.f32 %v173, %v599
    %v608 = vadd.f32 %v607, %v604
    %v609 = vmin.f32 %v608, 40.0
    %v610 = vmul.f32 %v609, 1.442695
    %v611 = vpow.pop %v610
    %v612 = vadd.f32 %v611, 2.0
    %v613 = vmul.f32 %v611, %v612
    %v614 = vadd.f32 %v613, 2.0
    %v615 = vrcp.pop %v614
    %v616 = vmul.f32 %v615, 2.0
    %v617 = vsub.f32 1.0, %v616
    %v618 = vmul.f32 %v608, %v617
    %619 = vst.msk [vmem:[#allocation3] sm:$0xff] %vm182, %v618
    // Predicated region
    $region30: #{tpu_custom_call.1} parent=1 // pred_check
      _
    $region31: #{tpu_custom_call.1} parent=1 // pred_check_branch
      %621 = sbr.rel (0) target = $region33
    $region32: #{tpu_custom_call.1} parent=1 // pred_region
      %s623 = ssub.s32 128, 128
      %624 = vsyncadd [#allocation4], %s623
      %s626 = sshll.u32 [#allocation3], 4
      %s627 = int_to_ptr.vmem [resolvable:$true] %s626
      %629 = dma.vmem_to_hbm [thread:$0]  %s627, 128, %s7, [#allocation4]
    $region33: #{tpu_custom_call.1} parent=1 // pred_fallthru
      _
    // Predicated region
    $region34: #{tpu_custom_call.1} parent=1 // pred_check
      _
    $region35: #{tpu_custom_call.1} parent=1 // pred_check_branch
      %631 = sbr.rel (0) target = $region37
    $region36: #{tpu_custom_call.1} parent=1 // pred_region
      %632 = dma.done [#allocation4], 128
    $region37: #{tpu_custom_call.1} parent=1 // pred_fallthru
      _
    %633 = vsyncpa [#allocation4], 1

</llo_original>
